<compile_context>
chip_gen: v6e
topology: v6e:2x2x1
jax: 0.10.0
libtpu: 0.0.40
codegen_flags: <defaults>
</compile_context>

<pallas_src>
import jax
import jax.numpy as jnp
import numpy as np
from jax.experimental import pallas as pl
from jax.experimental.pallas import tpu as pltpu

_LANE = 128
_SUBLANE = 8


def _round_up(v, m):
    return (v + m - 1) // m * m


def _pad2(a, rows, cols, dtype=jnp.float32):
    a = jnp.asarray(a, jnp.float32)
    a = jnp.pad(a, ((0, rows - a.shape[0]), (0, cols - a.shape[1])))
    return a.astype(dtype)


def _row(v, cols, dtype=jnp.float32):
    return _pad2(jnp.asarray(v, jnp.float32).reshape(1, -1), 1, cols, dtype)


def _make_kernel(use_gamma_x, use_gamma_h, h_pad):
    bf16 = jnp.bfloat16
    f32 = jnp.float32

    def kernel(*refs):
        it = iter(refs)
        h_ref = next(it)
        x_ref = next(it)
        m_ref = next(it)
        prex_ref = next(it)
        dh_ref = next(it)
        gx_ref = next(it) if use_gamma_x else None      # (2, Ip): [gamma_x, (1-gamma_x)*mean]
        gh_ref = next(it) if use_gamma_h else None      # (1, Hp): gamma_h
        wa_ref = next(it)                               # (2Ip+Hp, 3Hp) bf16 [W_x3;W_m3;W_s3]
        b3_ref = next(it)                               # (1, 3Hp) f32
        wh2_ref = next(it)                              # (Hp, 2Hp) bf16
        whu_ref = next(it)                              # (Hp, Hp) bf16
        hpost_ref = next(it)
        dhout_ref = next(it)
        xout_ref = next(it)

        h = h_ref[...]
        x = x_ref[...]
        m = m_ref[...]
        prex = prex_ref[...]
        dh = dh_ref[...]

        # --- input decay (gamma_x precomputed in the wrapper), f32 elementwise ---
        if use_gamma_x:
            x = m * x + (1.0 - m) * (gx_ref[0:1, :] * prex + gx_ref[1:2, :])
        else:
            x = m * x + (1.0 - m) * prex

        # --- hidden decay (gamma_h precomputed): one broadcast VPU multiply ---
        if use_gamma_h:
            h = gh_ref[...] * h

        # --- single wide MXU pass over K = 2*Ip + Hp for all x/m/dh gate terms ---
        a = jnp.concatenate([x, m, dh], axis=1).astype(bf16)        # (TB, 2Ip+Hp)
        g = (jnp.dot(a, wa_ref[...], preferred_element_type=f32)
             + b3_ref[...])                                          # (TB, 3Hp): [r|z|u]
        gh = jnp.dot(h.astype(bf16), wh2_ref[...],
                     preferred_element_type=f32)                     # (TB, 2Hp): [r|z]

        def sigmoid(v):  # one tanh (EUP) per element instead of exp + reciprocal
            return 0.5 * jnp.tanh(0.5 * v) + 0.5

        r = sigmoid(g[:, 0:h_pad] + gh[:, 0:h_pad])
        z = sigmoid(g[:, h_pad:2 * h_pad] + gh[:, h_pad:2 * h_pad])
        u = jnp.tanh(g[:, 2 * h_pad:3 * h_pad]
                     + jnp.dot((r * h).astype(bf16), whu_ref[...],
                               preferred_element_type=f32))

        hpost_ref[...] = (1.0 - z) * h + z * u
        dhout_ref[...] = z * (u - h)
        xout_ref[...] = x

    return kernel


def gru_tv_cell(h, x, m, d, prex, dh, p, *, gamma_x=True, gamma_h=True):
    """Pallas-backed forward of GRUTVCell. Returns (h_post, dh_new, x_new)."""
    f32, bf16 = jnp.float32, jnp.bfloat16
    B, I = x.shape
    H = h.shape[1]
    Ip = _round_up(I, _LANE)
    Hp = _round_up(H, _LANE)

    # Batch tiling: large tiles amortize the ~0.35us/step overhead; for B > 8 use
    # at least 2 tiles so the "parallel" axis can shard across both v7x TCs.
    if B > _SUBLANE:
        TB = min(256, _round_up(-(-B // 2), _SUBLANE))
    else:
        TB = _round_up(max(B, 1), _SUBLANE)
    Bp = _round_up(B, TB)
    nb = Bp // TB

    # ---- padded activations (f32; elementwise math must stay f32 on v5e) ----
    h_p = _pad2(h, Bp, Hp)
    x_p = _pad2(x, Bp, Ip)
    m_p = _pad2(m, Bp, Ip)
    prex_p = _pad2(prex, Bp, Ip)
    dh_p = _pad2(dh, Bp, Hp)

    d = jnp.asarray(d, f32)

    # ---- packed weights (gate order: r, z, u); bf16 MXU operands, f32 bias ----
    def pack3(ws, rows):
        return jnp.concatenate(
            [_pad2(jnp.asarray(w, f32).T, rows, Hp, bf16) for w in ws], axis=1)

    W_x3 = pack3([p["W_xr"], p["W_xz"], p["W_xh"]], Ip)    # (Ip, 3Hp)
    W_m3 = pack3([p["W_mr"], p["W_mz"], p["W_mu"]], Ip)    # (Ip, 3Hp)
    W_s3 = pack3([p["W_sr"], p["W_sz"], p["W_su"]], Hp)    # (Hp, 3Hp)
    W_A = jnp.concatenate([W_x3, W_m3, W_s3], axis=0)      # (2Ip+Hp, 3Hp) K-stacked
    W_h2 = pack3([p["W_hr"], p["W_hz"]], Hp)               # (Hp, 2Hp)
    W_hu = _pad2(jnp.asarray(p["W_hu"], f32).T, Hp, Hp, bf16)
    b3 = jnp.concatenate(
        [_row(p["b_xr"], Hp), _row(p["b_xz"], Hp), _row(p["b_xh"], Hp)], axis=1)  # f32

    spec_h = pl.BlockSpec((TB, Hp), lambda b: (b, 0))
    spec_i = pl.BlockSpec((TB, Ip), lambda b: (b, 0))

    def const_spec(arr):  # grid-invariant: VMEM-resident, single-buffered
        return pl.BlockSpec(arr.shape, lambda b: (0, 0),
                            pipeline_mode=pl.Buffered(1))

    inputs = [h_p, x_p, m_p, prex_p, dh_p]
    in_specs = [spec_h, spec_i, spec_i, spec_i, spec_h]

    # ---- batch-invariant decay terms hoisted out of the kernel ----
    const_inputs = []
    if gamma_x:
        g_x = jnp.exp(-jnp.maximum(0.0, jnp.asarray(p["w_dg_x"], f32) * d
                                   + jnp.asarray(p["b_dg_x"], f32)))          # (I,)
        gx_pack = jnp.concatenate(
            [_row(g_x, Ip),
             _row((1.0 - g_x) * jnp.asarray(p["mean_value"], f32), Ip)], axis=0)  # (2, Ip)
        const_inputs.append(gx_pack)
    if gamma_h:
        g_h = jnp.exp(-jnp.maximum(0.0, jnp.asarray(p["w_dg_h"], f32) @ d
                                   + jnp.asarray(p["b_dg_h"], f32)))          # (H,)
        const_inputs.append(_row(g_h, Hp))                                    # (1, Hp)
    const_inputs += [W_A, b3, W_h2, W_hu]

    inputs += const_inputs
    in_specs += [const_spec(a) for a in const_inputs]

    out_shape = (jax.ShapeDtypeStruct((Bp, Hp), f32),
                 jax.ShapeDtypeStruct((Bp, Hp), f32),
                 jax.ShapeDtypeStruct((Bp, Ip), f32))
    out_specs = (spec_h, spec_h, spec_i)

    # ---- explicit VMEM budget: single-buffered weights + double-buffered tiles ----
    weight_bytes = sum(int(np.prod(a.shape)) * a.dtype.itemsize for a in const_inputs)
    act_bytes = 2 * TB * (3 * Ip + 2 * Hp) * 4 + 2 * TB * (Ip + 2 * Hp) * 4
    vmem_limit = int(min(64 * 2 ** 20,
                         max(32 * 2 ** 20, weight_bytes + act_bytes + (8 << 20))))

    # advisory cost model for the XLA scheduler
    K = 2 * Ip + Hp
    mm_flops = 2 * Bp * (K * 3 * Hp + Hp * 2 * Hp + Hp * Hp)
    flops = mm_flops + 20 * Bp * (Hp + Ip)
    transcendentals = 3 * Bp * Hp
    bytes_accessed = (sum(int(np.prod(a.shape)) * a.dtype.itemsize for a in inputs)
                      + sum(int(np.prod(s.shape)) * 4 for s in out_shape))

    fn = pl.pallas_call(
        _make_kernel(gamma_x, gamma_h, Hp),
        out_shape=out_shape,
        grid=(nb,),
        in_specs=in_specs,
        out_specs=out_specs,
        # h -> h_post, dh -> dh_new, prex -> x_new (aliases the padded copies).
        input_output_aliases={0: 0, 4: 1, 3: 2},
        compiler_params=pltpu.CompilerParams(
            dimension_semantics=("parallel",),
            vmem_limit_bytes=vmem_limit),
        cost_estimate=pl.CostEstimate(flops=flops, transcendentals=transcendentals,
                                      bytes_accessed=bytes_accessed),
    )
    hp_, dhp_, xp_ = fn(*inputs)
    return hp_[:B, :H], dhp_[:B, :H], xp_[:B, :I]


def _reference(h, x, m, d, prex, dh, p, *, gamma_x=True, gamma_h=True):
    """Pure-JAX f32 replica of the PyTorch forward (for verification)."""
    if gamma_x:
        gx = jnp.exp(-jnp.maximum(0.0, p["w_dg_x"] * d + p["b_dg_x"]))
        x = m * x + (1 - m) * (gx * prex + (1 - gx) * p["mean_value"])
    else:
        x = m * x + (1 - m) * prex
    if gamma_h:
        gh = jnp.exp(-jnp.maximum(0.0, p["w_dg_h"] @ d + p["b_dg_h"]))
        h = gh * h
    lin = lambda a, W, b=None: a @ W.T + (b if b is not None else 0.0)
    r = jax.nn.sigmoid(lin(x, p["W_xr"], p["b_xr"]) + lin(h, p["W_hr"])
                       + lin(dh, p["W_sr"]) + lin(m, p["W_mr"]))
    z = jax.nn.sigmoid(lin(x, p["W_xz"], p["b_xz"]) + lin(h, p["W_hz"])
                       + lin(dh, p["W_sz"]) + lin(m, p["W_mz"]))
    u = jnp.tanh(lin(x, p["W_xh"], p["b_xh"]) + lin(r * h, p["W_hu"])
                 + lin(dh, p["W_su"]) + lin(m, p["W_mu"]))
    return (1 - z) * h + z * u, z * (u - h), x


def _init_params(key, input_size, hidden_size):
    I, H = input_size, hidden_size
    ks = jax.random.split(key, 32)
    n = lambda k, shp, s=0.1: (s * jax.random.normal(k, shp)).astype(jnp.float32)
    return {
        "w_dg_x": n(ks[0], (I,)),
        "w_dg_h": n(ks[1], (H, I)),
        "b_dg_x": n(ks[2], (I,)),
        "b_dg_h": n(ks[3], (H,)),
        "mean_value": n(ks[4], (I,)),
        # Linear(in, out, bias=True): weight (out, in)
        "W_xh": n(ks[5], (H, I)), "b_xh": n(ks[6], (H,)),
        "W_xz": n(ks[7], (H, I)), "b_xz": n(ks[8], (H,)),
        "W_xr": n(ks[9], (H, I)), "b_xr": n(ks[10], (H,)),
        # hidden / state / mask projections, bias=False
        "W_hu": n(ks[11], (H, H)), "W_hz": n(ks[12], (H, H)), "W_hr": n(ks[13], (H, H)),
        "W_su": n(ks[14], (H, H)), "W_sz": n(ks[15], (H, H)), "W_sr": n(ks[16], (H, H)),
        "W_mu": n(ks[17], (H, I)), "W_mz": n(ks[18], (H, I)), "W_mr": n(ks[19], (H, I)),
    }


if __name__ == "__main__":
    B, I, H = 8, 32, 64
    key = jax.random.PRNGKey(0)
    kp, kh, kx, km, kd, kpx, kdh = jax.random.split(key, 7)

    params = _init_params(kp, I, H)

    h = jax.random.normal(kh, (B, H), dtype=jnp.float32)
    x = jax.random.normal(kx, (B, I), dtype=jnp.float32)
    m = jax.random.bernoulli(km, 0.7, (B, I)).astype(jnp.float32)   # observation mask
    d = jax.random.uniform(kd, (I,), dtype=jnp.float32) * 2.0        # time gaps >= 0
    prex = jax.random.normal(kpx, (B, I), dtype=jnp.float32)
    dh = jax.random.normal(kdh, (B, H), dtype=jnp.float32)

    fwd = jax.jit(gru_tv_cell, static_argnames=("gamma_x", "gamma_h"))

    for gx, gh in [(True, True), (True, False), (False, True), (False, False)]:
        outs = fwd(h, x, m, d, prex, dh, params, gamma_x=gx, gamma_h=gh)
        jax.block_until_ready(outs)
        refs = _reference(h, x, m, d, prex, dh, params, gamma_x=gx, gamma_h=gh)
        # bf16 MXU operands -> looser tolerance on h_post / dh_new; x path is pure f32.
        np.testing.assert_allclose(np.asarray(outs[0]), np.asarray(refs[0]),
                                   rtol=5e-2, atol=5e-2)
        np.testing.assert_allclose(np.asarray(outs[1]), np.asarray(refs[1]),
                                   rtol=5e-2, atol=5e-2)
        np.testing.assert_allclose(np.asarray(outs[2]), np.asarray(refs[2]),
                                   rtol=1e-4, atol=1e-5)

    print("KERNEL_OK")
</pallas_src>

<mosaic_0001>
module attributes {stable_mosaic.version = 11 : i64} {
  func.func @kernel(%arg0: i32, %arg1: memref<8x128xf32, #tpu.memory_space<vmem>>, %arg2: memref<8x128xf32, #tpu.memory_space<vmem>>, %arg3: memref<8x128xf32, #tpu.memory_space<vmem>>, %arg4: memref<8x128xf32, #tpu.memory_space<vmem>>, %arg5: memref<8x128xf32, #tpu.memory_space<vmem>>, %arg6: memref<2x128xf32, #tpu.memory_space<vmem>>, %arg7: memref<1x128xf32, #tpu.memory_space<vmem>>, %arg8: memref<384x384xbf16, #tpu.memory_space<vmem>>, %arg9: memref<1x384xf32, #tpu.memory_space<vmem>>, %arg10: memref<128x256xbf16, #tpu.memory_space<vmem>>, %arg11: memref<128x128xbf16, #tpu.memory_space<vmem>>, %arg12: memref<8x128xf32, #tpu.memory_space<vmem>>, %arg13: memref<8x128xf32, #tpu.memory_space<vmem>>, %arg14: memref<8x128xf32, #tpu.memory_space<vmem>>) attributes {dimension_semantics = [#tpu.dimension_semantics<parallel>], iteration_bounds = array<i64: 1>, scalar_prefetch = 0 : i64, scratch_operands = 0 : i64, tpu.core_type = #tpu.core_type<tc>, window_params = [{transform_indices = @transform_0, window_bounds = array<i64: 8, 128>}, {transform_indices = @transform_1, window_bounds = array<i64: 8, 128>}, {transform_indices = @transform_2, window_bounds = array<i64: 8, 128>}, {transform_indices = @transform_3, window_bounds = array<i64: 8, 128>}, {transform_indices = @transform_4, window_bounds = array<i64: 8, 128>}, {pipeline_mode = #tpu.pipeline_mode<synchronous>, transform_indices = @transform_5, window_bounds = array<i64: 2, 128>}, {pipeline_mode = #tpu.pipeline_mode<synchronous>, transform_indices = @transform_6, window_bounds = array<i64: 1, 128>}, {pipeline_mode = #tpu.pipeline_mode<synchronous>, transform_indices = @transform_7, window_bounds = array<i64: 384, 384>}, {pipeline_mode = #tpu.pipeline_mode<synchronous>, transform_indices = @transform_8, window_bounds = array<i64: 1, 384>}, {pipeline_mode = #tpu.pipeline_mode<synchronous>, transform_indices = @transform_9, window_bounds = array<i64: 128, 256>}, {pipeline_mode = #tpu.pipeline_mode<synchronous>, transform_indices = @transform_10, window_bounds = array<i64: 128, 128>}, {transform_indices = @transform_11, window_bounds = array<i64: 8, 128>}, {transform_indices = @transform_12, window_bounds = array<i64: 8, 128>}, {transform_indices = @transform_13, window_bounds = array<i64: 8, 128>}]} {
    %c0 = arith.constant 0 : index
    %c0_0 = arith.constant 0 : index
    %0 = vector.load %arg1[%c0, %c0_0] : memref<8x128xf32, #tpu.memory_space<vmem>>, vector<8x128xf32>
    %c0_1 = arith.constant 0 : index
    %c0_2 = arith.constant 0 : index
    %1 = vector.load %arg2[%c0_1, %c0_2] : memref<8x128xf32, #tpu.memory_space<vmem>>, vector<8x128xf32>
    %c0_3 = arith.constant 0 : index
    %c0_4 = arith.constant 0 : index
    %2 = vector.load %arg3[%c0_3, %c0_4] : memref<8x128xf32, #tpu.memory_space<vmem>>, vector<8x128xf32>
    %c0_5 = arith.constant 0 : index
    %c0_6 = arith.constant 0 : index
    %3 = vector.load %arg4[%c0_5, %c0_6] : memref<8x128xf32, #tpu.memory_space<vmem>>, vector<8x128xf32>
    %c0_7 = arith.constant 0 : index
    %c0_8 = arith.constant 0 : index
    %4 = vector.load %arg5[%c0_7, %c0_8] : memref<8x128xf32, #tpu.memory_space<vmem>>, vector<8x128xf32>
    %5 = arith.mulf %2, %1 : vector<8x128xf32>
    %cst = arith.constant 1.000000e+00 : f32
    %6 = vector.broadcast %cst : f32 to vector<8x128xf32>
    %7 = arith.subf %6, %2 : vector<8x128xf32>
    %c0_9 = arith.constant 0 : index
    %c0_10 = arith.constant 0 : index
    %8 = vector.load %arg6[%c0_9, %c0_10] : memref<2x128xf32, #tpu.memory_space<vmem>>, vector<1x128xf32>
    %9 = vector.broadcast %8 : vector<1x128xf32> to vector<8x128xf32>
    %10 = arith.mulf %9, %3 : vector<8x128xf32>
    %c1 = arith.constant 1 : index
    %c0_11 = arith.constant 0 : index
    %11 = vector.load %arg6[%c1, %c0_11] : memref<2x128xf32, #tpu.memory_space<vmem>>, vector<1x128xf32>
    %12 = vector.broadcast %11 : vector<1x128xf32> to vector<8x128xf32>
    %13 = arith.addf %10, %12 : vector<8x128xf32>
    %14 = arith.mulf %7, %13 : vector<8x128xf32>
    %15 = arith.addf %5, %14 : vector<8x128xf32>
    %c0_12 = arith.constant 0 : index
    %c0_13 = arith.constant 0 : index
    %16 = vector.load %arg7[%c0_12, %c0_13] : memref<1x128xf32, #tpu.memory_space<vmem>>, vector<1x128xf32>
    %17 = vector.broadcast %16 : vector<1x128xf32> to vector<8x128xf32>
    %18 = arith.mulf %17, %0 : vector<8x128xf32>
    %19 = tpu.concatenate %15, %2, %4 in 1 : vector<8x128xf32>, vector<8x128xf32>, vector<8x128xf32> -> vector<8x384xf32>
    %20 = arith.truncf %19 : vector<8x384xf32> to vector<8x384xbf16>
    %c0_14 = arith.constant 0 : index
    %c0_15 = arith.constant 0 : index
    %21 = vector.load %arg8[%c0_14, %c0_15] : memref<384x384xbf16, #tpu.memory_space<vmem>>, vector<384x384xbf16>
    %cst_16 = arith.constant dense<0.000000e+00> : vector<8x384xf32>
    %22 = tpu.matmul %20, %21, %cst_16 {dimension_numbers = #tpu.dot_dimension_numbers<[1], [0], [0], [1], [0, 0, 1, 1], [], []>} : vector<8x384xbf16>, vector<384x384xbf16>, vector<8x384xf32> -> vector<8x384xf32>
    %c0_17 = arith.constant 0 : index
    %c0_18 = arith.constant 0 : index
    %23 = vector.load %arg9[%c0_17, %c0_18] : memref<1x384xf32, #tpu.memory_space<vmem>>, vector<1x384xf32>
    %24 = vector.broadcast %23 : vector<1x384xf32> to vector<8x384xf32>
    %25 = arith.addf %22, %24 : vector<8x384xf32>
    %26 = arith.truncf %18 : vector<8x128xf32> to vector<8x128xbf16>
    %c0_19 = arith.constant 0 : index
    %c0_20 = arith.constant 0 : index
    %27 = vector.load %arg10[%c0_19, %c0_20] : memref<128x256xbf16, #tpu.memory_space<vmem>>, vector<128x256xbf16>
    %cst_21 = arith.constant dense<0.000000e+00> : vector<8x256xf32>
    %28 = tpu.matmul %26, %27, %cst_21 {dimension_numbers = #tpu.dot_dimension_numbers<[1], [0], [0], [1], [0, 0, 1, 1], [], []>} : vector<8x128xbf16>, vector<128x256xbf16>, vector<8x256xf32> -> vector<8x256xf32>
    %29 = vector.extract_strided_slice %25 {offsets = [0, 0], sizes = [8, 128], strides = [1, 1]} : vector<8x384xf32> to vector<8x128xf32>
    %30 = vector.extract_strided_slice %28 {offsets = [0, 0], sizes = [8, 128], strides = [1, 1]} : vector<8x256xf32> to vector<8x128xf32>
    %31 = arith.addf %29, %30 : vector<8x128xf32>
    %cst_22 = arith.constant 5.000000e-01 : f32
    %32 = vector.broadcast %cst_22 : f32 to vector<8x128xf32>
    %33 = arith.mulf %32, %31 : vector<8x128xf32>
    %34 = math.tanh %33 : vector<8x128xf32>
    %cst_23 = arith.constant 5.000000e-01 : f32
    %35 = vector.broadcast %cst_23 : f32 to vector<8x128xf32>
    %36 = arith.mulf %35, %34 : vector<8x128xf32>
    %cst_24 = arith.constant 5.000000e-01 : f32
    %37 = vector.broadcast %cst_24 : f32 to vector<8x128xf32>
    %38 = arith.addf %36, %37 : vector<8x128xf32>
    %39 = vector.extract_strided_slice %25 {offsets = [0, 128], sizes = [8, 128], strides = [1, 1]} : vector<8x384xf32> to vector<8x128xf32>
    %40 = vector.extract_strided_slice %28 {offsets = [0, 128], sizes = [8, 128], strides = [1, 1]} : vector<8x256xf32> to vector<8x128xf32>
    %41 = arith.addf %39, %40 : vector<8x128xf32>
    %cst_25 = arith.constant 5.000000e-01 : f32
    %42 = vector.broadcast %cst_25 : f32 to vector<8x128xf32>
    %43 = arith.mulf %42, %41 : vector<8x128xf32>
    %44 = math.tanh %43 : vector<8x128xf32>
    %cst_26 = arith.constant 5.000000e-01 : f32
    %45 = vector.broadcast %cst_26 : f32 to vector<8x128xf32>
    %46 = arith.mulf %45, %44 : vector<8x128xf32>
    %cst_27 = arith.constant 5.000000e-01 : f32
    %47 = vector.broadcast %cst_27 : f32 to vector<8x128xf32>
    %48 = arith.addf %46, %47 : vector<8x128xf32>
    %49 = vector.extract_strided_slice %25 {offsets = [0, 256], sizes = [8, 128], strides = [1, 1]} : vector<8x384xf32> to vector<8x128xf32>
    %50 = arith.mulf %38, %18 : vector<8x128xf32>
    %51 = arith.truncf %50 : vector<8x128xf32> to vector<8x128xbf16>
    %c0_28 = arith.constant 0 : index
    %c0_29 = arith.constant 0 : index
    %52 = vector.load %arg11[%c0_28, %c0_29] : memref<128x128xbf16, #tpu.memory_space<vmem>>, vector<128x128xbf16>
    %cst_30 = arith.constant dense<0.000000e+00> : vector<8x128xf32>
    %53 = tpu.matmul %51, %52, %cst_30 {dimension_numbers = #tpu.dot_dimension_numbers<[1], [0], [0], [1], [0, 0, 1, 1], [], []>} : vector<8x128xbf16>, vector<128x128xbf16>, vector<8x128xf32> -> vector<8x128xf32>
    %54 = arith.addf %49, %53 : vector<8x128xf32>
    %55 = math.tanh %54 : vector<8x128xf32>
    %cst_31 = arith.constant 1.000000e+00 : f32
    %56 = vector.broadcast %cst_31 : f32 to vector<8x128xf32>
    %57 = arith.subf %56, %48 : vector<8x128xf32>
    %58 = arith.mulf %57, %18 : vector<8x128xf32>
    %59 = arith.mulf %48, %55 : vector<8x128xf32>
    %60 = arith.addf %58, %59 : vector<8x128xf32>
    %c0_32 = arith.constant 0 : index
    %c0_33 = arith.constant 0 : index
    %61 = vector.load %arg12[%c0_32, %c0_33] : memref<8x128xf32, #tpu.memory_space<vmem>>, vector<8x128xf32>
    tpu.vector_store %arg12[%c0_32, %c0_33], %60 {strides = array<i32>} : memref<8x128xf32, #tpu.memory_space<vmem>>, vector<8x128xf32>,
    %62 = arith.subf %55, %18 : vector<8x128xf32>
    %63 = arith.mulf %48, %62 : vector<8x128xf32>
    %c0_34 = arith.constant 0 : index
    %c0_35 = arith.constant 0 : index
    %64 = vector.load %arg13[%c0_34, %c0_35] : memref<8x128xf32, #tpu.memory_space<vmem>>, vector<8x128xf32>
    tpu.vector_store %arg13[%c0_34, %c0_35], %63 {strides = array<i32>} : memref<8x128xf32, #tpu.memory_space<vmem>>, vector<8x128xf32>,
    %c0_36 = arith.constant 0 : index
    %c0_37 = arith.constant 0 : index
    %65 = vector.load %arg14[%c0_36, %c0_37] : memref<8x128xf32, #tpu.memory_space<vmem>>, vector<8x128xf32>
    tpu.vector_store %arg14[%c0_36, %c0_37], %15 {strides = array<i32>} : memref<8x128xf32, #tpu.memory_space<vmem>>, vector<8x128xf32>,
    return
  }
  func.func @transform_0(%arg0: i32) -> (i32, i32) {
    %c0_i32 = arith.constant 0 : i32
    %c0_i32_0 = arith.constant 0 : i32
    return %arg0, %c0_i32 : i32, i32
  }
  func.func @transform_1(%arg0: i32) -> (i32, i32) {
    %c0_i32 = arith.constant 0 : i32
    %c0_i32_0 = arith.constant 0 : i32
    return %arg0, %c0_i32 : i32, i32
  }
  func.func @transform_2(%arg0: i32) -> (i32, i32) {
    %c0_i32 = arith.constant 0 : i32
    %c0_i32_0 = arith.constant 0 : i32
    return %arg0, %c0_i32 : i32, i32
  }
  func.func @transform_3(%arg0: i32) -> (i32, i32) {
    %c0_i32 = arith.constant 0 : i32
    %c0_i32_0 = arith.constant 0 : i32
    return %arg0, %c0_i32 : i32, i32
  }
  func.func @transform_4(%arg0: i32) -> (i32, i32) {
    %c0_i32 = arith.constant 0 : i32
    %c0_i32_0 = arith.constant 0 : i32
    return %arg0, %c0_i32 : i32, i32
  }
  func.func @transform_5(%arg0: i32) -> (i32, i32) {
    %c0_i32 = arith.constant 0 : i32
    %c0_i32_0 = arith.constant 0 : i32
    %c0_i32_1 = arith.constant 0 : i32
    return %c0_i32, %c0_i32_0 : i32, i32
  }
  func.func @transform_6(%arg0: i32) -> (i32, i32) {
    %c0_i32 = arith.constant 0 : i32
    %c0_i32_0 = arith.constant 0 : i32
    %c0_i32_1 = arith.constant 0 : i32
    return %c0_i32, %c0_i32_0 : i32, i32
  }
  func.func @transform_7(%arg0: i32) -> (i32, i32) {
    %c0_i32 = arith.constant 0 : i32
    %c0_i32_0 = arith.constant 0 : i32
    %c0_i32_1 = arith.constant 0 : i32
    return %c0_i32, %c0_i32_0 : i32, i32
  }
  func.func @transform_8(%arg0: i32) -> (i32, i32) {
    %c0_i32 = arith.constant 0 : i32
    %c0_i32_0 = arith.constant 0 : i32
    %c0_i32_1 = arith.constant 0 : i32
    return %c0_i32, %c0_i32_0 : i32, i32
  }
  func.func @transform_9(%arg0: i32) -> (i32, i32) {
    %c0_i32 = arith.constant 0 : i32
    %c0_i32_0 = arith.constant 0 : i32
    %c0_i32_1 = arith.constant 0 : i32
    return %c0_i32, %c0_i32_0 : i32, i32
  }
  func.func @transform_10(%arg0: i32) -> (i32, i32) {
    %c0_i32 = arith.constant 0 : i32
    %c0_i32_0 = arith.constant 0 : i32
    %c0_i32_1 = arith.constant 0 : i32
    return %c0_i32, %c0_i32_0 : i32, i32
  }
  func.func @transform_11(%arg0: i32) -> (i32, i32) {
    %c0_i32 = arith.constant 0 : i32
    %c0_i32_0 = arith.constant 0 : i32
    return %arg0, %c0_i32 : i32, i32
  }
  func.func @transform_12(%arg0: i32) -> (i32, i32) {
    %c0_i32 = arith.constant 0 : i32
    %c0_i32_0 = arith.constant 0 : i32
    return %arg0, %c0_i32 : i32, i32
  }
  func.func @transform_13(%arg0: i32) -> (i32, i32) {
    %c0_i32 = arith.constant 0 : i32
    %c0_i32_0 = arith.constant 0 : i32
    return %arg0, %c0_i32 : i32, i32
  }
}

</mosaic_0001>

<llo_original>
// kernel: gru_tv_cell.1
$region0: #{gru_tv_cell.1}
  #allocation0 [shape = 'u32[]', space=smem, size = 0x4, offset = 0x4, fixed_abs, tag = 'smem constant byte address 0x4 - core index']
  #allocation1 [shape = 'u32[144,128]{1,0:T(1,128)}', space=vmem, size = 0x12000, scoped, tag = 'internal scratch']
  %s0 = inlined_call_operand.vmem [shape: f32[8,128], index: 0, kind: input, shape index: {}, may-alias: {0,11}]
  %s1 = inlined_call_operand.vmem [shape: f32[8,128], index: 1, kind: input, shape index: {}]
  %s2 = inlined_call_operand.vmem [shape: f32[8,128], index: 2, kind: input, shape index: {}]
  %s3 = inlined_call_operand.vmem [shape: f32[8,128], index: 3, kind: input, shape index: {}, may-alias: {3,13}]
  %s4 = inlined_call_operand.vmem [shape: f32[8,128], index: 4, kind: input, shape index: {}, may-alias: {4,12}]
  %s5 = inlined_call_operand.vmem [shape: f32[2,128], index: 5, kind: input, shape index: {}]
  %s6 = inlined_call_operand.vmem [shape: f32[1,128], index: 6, kind: input, shape index: {}]
  %s7 = inlined_call_operand.vmem [shape: bf16[384,384], index: 7, kind: input, shape index: {}]
  %s8 = inlined_call_operand.vmem [shape: f32[1,384], index: 8, kind: input, shape index: {}]
  %s9 = inlined_call_operand.vmem [shape: bf16[128,256], index: 9, kind: input, shape index: {}]
  %s10 = inlined_call_operand.vmem [shape: bf16[128,128], index: 10, kind: input, shape index: {}]
  %s11 = inlined_call_operand.vmem [shape: f32[8,128], index: 11, kind: output, shape index: {0}, may-alias: {0,11}]
  %s12 = inlined_call_operand.vmem [shape: f32[8,128], index: 12, kind: output, shape index: {1}, may-alias: {4,12}]
  %s13 = inlined_call_operand.vmem [shape: f32[8,128], index: 13, kind: output, shape index: {2}, may-alias: {3,13}]
  %14 = xla_tuple %s11, %s12, %s13
  %s15 = sld [smem:[#allocation0]]
  $region70: #{gru_tv_cell.1} parent=0
    _
  %s17 = ssub.s32 1, %s15
  %s18 = scalar_select 0, %s17, %s15
  // Predicated region
  $region2: #{gru_tv_cell.1} parent=0 // pred_check
    _
  $region3: #{gru_tv_cell.1} parent=0 // pred_check_branch
    %20 = sbr.rel (0) target = $region5
  $region4: #{gru_tv_cell.1} parent=0 // pred_region
    _
  $region5: #{gru_tv_cell.1} parent=0 // pred_fallthru
    _
  // Predicated region
  $region6: #{gru_tv_cell.1} parent=0 // pred_check
    _
  $region7: #{gru_tv_cell.1} parent=0 // pred_check_branch
    %22 = sbr.rel (0) target = $region9
  $region8: #{gru_tv_cell.1} parent=0 // pred_region
    _
  $region9: #{gru_tv_cell.1} parent=0 // pred_fallthru
    _
  // Predicated region
  $region10: #{gru_tv_cell.1} parent=0 // pred_check
    _
  $region11: #{gru_tv_cell.1} parent=0 // pred_check_branch
    %24 = sbr.rel (0) target = $region13
  $region12: #{gru_tv_cell.1} parent=0 // pred_region
    _
  $region13: #{gru_tv_cell.1} parent=0 // pred_fallthru
    _
  // Predicated region
  $region14: #{gru_tv_cell.1} parent=0 // pred_check
    _
  $region15: #{gru_tv_cell.1} parent=0 // pred_check_branch
    %26 = sbr.rel (0) target = $region17
  $region16: #{gru_tv_cell.1} parent=0 // pred_region
    _
  $region17: #{gru_tv_cell.1} parent=0 // pred_fallthru
    _
  // Predicated region
  $region18: #{gru_tv_cell.1} parent=0 // pred_check
    _
  $region19: #{gru_tv_cell.1} parent=0 // pred_check_branch
    %28 = sbr.rel (0) target = $region21
  $region20: #{gru_tv_cell.1} parent=0 // pred_region
    _
  $region21: #{gru_tv_cell.1} parent=0 // pred_fallthru
    _
  // Predicated region
  $region22: #{gru_tv_cell.1} parent=0 // pred_check
    _
  $region23: #{gru_tv_cell.1} parent=0 // pred_check_branch
    %30 = sbr.rel (0) target = $region25
  $region24: #{gru_tv_cell.1} parent=0 // pred_region
    _
  $region25: #{gru_tv_cell.1} parent=0 // pred_fallthru
    _
  // Predicated region
  $region26: #{gru_tv_cell.1} parent=0 // pred_check
    _
  $region27: #{gru_tv_cell.1} parent=0 // pred_check_branch
    %32 = sbr.rel (0) target = $region29
  $region28: #{gru_tv_cell.1} parent=0 // pred_region
    _
  $region29: #{gru_tv_cell.1} parent=0 // pred_fallthru
    _
  // Predicated region
  $region30: #{gru_tv_cell.1} parent=0 // pred_check
    _
  $region31: #{gru_tv_cell.1} parent=0 // pred_check_branch
    %34 = sbr.rel (0) target = $region33
  $region32: #{gru_tv_cell.1} parent=0 // pred_region
    _
  $region33: #{gru_tv_cell.1} parent=0 // pred_fallthru
    _
  // Predicated region
  $region34: #{gru_tv_cell.1} parent=0 // pred_check
    _
  $region35: #{gru_tv_cell.1} parent=0 // pred_check_branch
    %36 = sbr.rel (0) target = $region37
  $region36: #{gru_tv_cell.1} parent=0 // pred_region
    _
  $region37: #{gru_tv_cell.1} parent=0 // pred_fallthru
    _
  // Predicated region
  $region38: #{gru_tv_cell.1} parent=0 // pred_check
    _
  $region39: #{gru_tv_cell.1} parent=0 // pred_check_branch
    %38 = sbr.rel (0) target = $region41
  $region40: #{gru_tv_cell.1} parent=0 // pred_region
    _
  $region41: #{gru_tv_cell.1} parent=0 // pred_fallthru
    _
  // Predicated region
  $region42: #{gru_tv_cell.1} parent=0 // pred_check
    _
  $region43: #{gru_tv_cell.1} parent=0 // pred_check_branch
    %40 = sbr.rel (0) target = $region45
  $region44: #{gru_tv_cell.1} parent=0 // pred_region
    _
  $region45: #{gru_tv_cell.1} parent=0 // pred_fallthru
    _
  %v42 = vld [vmem:[%s0] sm:$0xff]
  %v43 = vld [vmem:[%s1] sm:$0xff]
  %v44 = vld [vmem:[%s2] sm:$0xff]
  %v45 = vld [vmem:[%s3] sm:$0xff]
  %v46 = vld [vmem:[%s4] sm:$0xff]
  %v47 = vmul.f32 %v44, %v43
  %v48 = vsub.f32 1.0, %v44
  %v49 = vld [vmem:[%s5] sm:$0x1]
  %v50 = vlaneseq
  %v51 = vshrl.u32 %v50, 7
  %v52 = vsub.s32 0, %v51
  %v53 = vrot.slane %v49, %v52
  %v54 = vmul.f32 %v53, %v45
  %v55 = vld [vmem:[%s5 + $0x1] sm:$0x1]
  %v56 = vlaneseq
  %v57 = vshrl.u32 %v56, 7
  %v58 = vsub.s32 0, %v57
  %v59 = vrot.slane %v55, %v58
  %v60 = vadd.f32 %v54, %v59
  %v61 = vmul.f32 %v48, %v60
  %v62 = vadd.f32 %v47, %v61
  %v63 = vld [vmem:[%s6] sm:$0x1]
  %v65 = vlaneseq
  %v66 = vshrl.u32 %v65, 7
  %v67 = vsub.s32 0, %v66
  %v68 = vrot.slane %v63, %v67
  %v70 = vmul.f32 %v68, %v42
  %v71 = vpack.c.bf16 %v62, %v62
  %v72 = vpack.c.bf16 %v44, %v44
  %v73 = vpack.c.bf16 %v46, %v46
  %v74 = vld [vmem:[%s7] sm:$0xff]
  %v75 = vld [vmem:[%s7 + $0x8] sm:$0xf]
  %v76 = vld [vmem:[%s7 + $0xc] sm:$0xff]
  %v77 = vld [vmem:[%s7 + $0x14] sm:$0xf]
  %v78 = vld [vmem:[%s7 + $0x18] sm:$0xff]
  %v79 = vld [vmem:[%s7 + $0x20] sm:$0xf]
  %v80 = vld [vmem:[%s7 + $0x24] sm:$0xff]
  %v81 = vld [vmem:[%s7 + $0x2c] sm:$0xf]
  %v82 = vld [vmem:[%s7 + $0x30] sm:$0xff]
  %v83 = vld [vmem:[%s7 + $0x38] sm:$0xf]
  %v84 = vld [vmem:[%s7 + $0x3c] sm:$0xff]
  %v85 = vld [vmem:[%s7 + $0x44] sm:$0xf]
  %v86 = vld [vmem:[%s7 + $0x48] sm:$0xff]
  %v87 = vld [vmem:[%s7 + $0x50] sm:$0xf]
  %v88 = vld [vmem:[%s7 + $0x54] sm:$0xff]
  %v89 = vld [vmem:[%s7 + $0x5c] sm:$0xf]
  %v90 = vld [vmem:[%s7 + $0x60] sm:$0xff]
  %v91 = vld [vmem:[%s7 + $0x68] sm:$0xf]
  %v92 = vld [vmem:[%s7 + $0x6c] sm:$0xff]
  %v93 = vld [vmem:[%s7 + $0x74] sm:$0xf]
  %v94 = vld [vmem:[%s7 + $0x78] sm:$0xff]
  %v95 = vld [vmem:[%s7 + $0x80] sm:$0xf]
  %v96 = vld [vmem:[%s7 + $0x84] sm:$0xff]
  %v97 = vld [vmem:[%s7 + $0x8c] sm:$0xf]
  %v98 = vld [vmem:[%s7 + $0x90] sm:$0xff]
  %v99 = vld [vmem:[%s7 + $0x98] sm:$0xf]
  %v100 = vld [vmem:[%s7 + $0x9c] sm:$0xff]
  %v101 = vld [vmem:[%s7 + $0xa4] sm:$0xf]
  %v102 = vld [vmem:[%s7 + $0xa8] sm:$0xff]
  %v103 = vld [vmem:[%s7 + $0xb0] sm:$0xf]
  %v104 = vld [vmem:[%s7 + $0xb4] sm:$0xff]
  %v105 = vld [vmem:[%s7 + $0xbc] sm:$0xf]
  %v106 = vld [vmem:[%s7 + $0xc0] sm:$0xff]
  %v107 = vld [vmem:[%s7 + $0xc8] sm:$0xf]
  %v108 = vld [vmem:[%s7 + $0xcc] sm:$0xff]
  %v109 = vld [vmem:[%s7 + $0xd4] sm:$0xf]
  %v110 = vld [vmem:[%s7 + $0xd8] sm:$0xff]
  %v111 = vld [vmem:[%s7 + $0xe0] sm:$0xf]
  %v112 = vld [vmem:[%s7 + $0xe4] sm:$0xff]
  %v113 = vld [vmem:[%s7 + $0xec] sm:$0xf]
  %v114 = vld [vmem:[%s7 + $0xf0] sm:$0xff]
  %v115 = vld [vmem:[%s7 + $0xf8] sm:$0xf]
  %v116 = vld [vmem:[%s7 + $0xfc] sm:$0xff]
  %v117 = vld [vmem:[%s7 + $0x104] sm:$0xf]
  %v118 = vld [vmem:[%s7 + $0x108] sm:$0xff]
  %v119 = vld [vmem:[%s7 + $0x110] sm:$0xf]
  %v120 = vld [vmem:[%s7 + $0x114] sm:$0xff]
  %v121 = vld [vmem:[%s7 + $0x11c] sm:$0xf]
  %v122 = vld [vmem:[%s7 + $0x120] sm:$0xff]
  %v123 = vld [vmem:[%s7 + $0x128] sm:$0xf]
  %v124 = vld [vmem:[%s7 + $0x12c] sm:$0xff]
  %v125 = vld [vmem:[%s7 + $0x134] sm:$0xf]
  %v126 = vld [vmem:[%s7 + $0x138] sm:$0xff]
  %v127 = vld [vmem:[%s7 + $0x140] sm:$0xf]
  %v128 = vld [vmem:[%s7 + $0x144] sm:$0xff]
  %v129 = vld [vmem:[%s7 + $0x14c] sm:$0xf]
  %v130 = vld [vmem:[%s7 + $0x150] sm:$0xff]
  %v131 = vld [vmem:[%s7 + $0x158] sm:$0xf]
  %v132 = vld [vmem:[%s7 + $0x15c] sm:$0xff]
  %v133 = vld [vmem:[%s7 + $0x164] sm:$0xf]
  %v134 = vld [vmem:[%s7 + $0x168] sm:$0xff]
  %v135 = vld [vmem:[%s7 + $0x170] sm:$0xf]
  %v136 = vld [vmem:[%s7 + $0x174] sm:$0xff]
  %v137 = vld [vmem:[%s7 + $0x17c] sm:$0xf]
  %v138 = vld [vmem:[%s7 + $0x180] sm:$0xff]
  %v139 = vld [vmem:[%s7 + $0x188] sm:$0xf]
  %v140 = vld [vmem:[%s7 + $0x18c] sm:$0xff]
  %v141 = vld [vmem:[%s7 + $0x194] sm:$0xf]
  %v142 = vld [vmem:[%s7 + $0x198] sm:$0xff]
  %v143 = vld [vmem:[%s7 + $0x1a0] sm:$0xf]
  %v144 = vld [vmem:[%s7 + $0x1a4] sm:$0xff]
  %v145 = vld [vmem:[%s7 + $0x1ac] sm:$0xf]
  %v146 = vld [vmem:[%s7 + $0x1b0] sm:$0xff]
  %v147 = vld [vmem:[%s7 + $0x1b8] sm:$0xf]
  %v148 = vld [vmem:[%s7 + $0x1bc] sm:$0xff]
  %v149 = vld [vmem:[%s7 + $0x1c4] sm:$0xf]
  %v150 = vld [vmem:[%s7 + $0x1c8] sm:$0xff]
  %v151 = vld [vmem:[%s7 + $0x1d0] sm:$0xf]
  %v152 = vld [vmem:[%s7 + $0x1d4] sm:$0xff]
  %v153 = vld [vmem:[%s7 + $0x1dc] sm:$0xf]
  %v154 = vld [vmem:[%s7 + $0x1e0] sm:$0xff]
  %v155 = vld [vmem:[%s7 + $0x1e8] sm:$0xf]
  %v156 = vld [vmem:[%s7 + $0x1ec] sm:$0xff]
  %v157 = vld [vmem:[%s7 + $0x1f4] sm:$0xf]
  %v158 = vld [vmem:[%s7 + $0x1f8] sm:$0xff]
  %v159 = vld [vmem:[%s7 + $0x200] sm:$0xf]
  %v160 = vld [vmem:[%s7 + $0x204] sm:$0xff]
  %v161 = vld [vmem:[%s7 + $0x20c] sm:$0xf]
  %v162 = vld [vmem:[%s7 + $0x210] sm:$0xff]
  %v163 = vld [vmem:[%s7 + $0x218] sm:$0xf]
  %v164 = vld [vmem:[%s7 + $0x21c] sm:$0xff]
  %v165 = vld [vmem:[%s7 + $0x224] sm:$0xf]
  %v166 = vld [vmem:[%s7 + $0x228] sm:$0xff]
  %v167 = vld [vmem:[%s7 + $0x230] sm:$0xf]
  %v168 = vld [vmem:[%s7 + $0x234] sm:$0xff]
  %v169 = vld [vmem:[%s7 + $0x23c] sm:$0xf]
  %v170 = vld [vmem:[%s8] sm:$0x7]
  %v172 = vlaneseq
  %v173 = vshrl.u32 %v172, 7
  %v174 = vsub.s32 0, %v173
  %v175 = vrot.slane %v170, %v174
  %v176 = vlaneseq
  %v177 = vshrl.u32 %v176, 7
  %v178 = vsub.s32 1, %v177
  %v179 = vrot.slane %v170, %v178
  %v180 = vlaneseq
  %v181 = vshrl.u32 %v180, 7
  %v182 = vsub.s32 2, %v181
  %v183 = vrot.slane %v170, %v182
  %v283 = vunpack.c.l.b16 %v74
  %v284 = vunpack.c.h.b16 %v74
  %v285 = vunpack.c.l.b16 %v75
  %v286 = vunpack.c.l.b16 %v76
  %v287 = vunpack.c.h.b16 %v76
  %v288 = vunpack.c.l.b16 %v77
  %v289 = vunpack.c.l.b16 %v78
  %v290 = vunpack.c.h.b16 %v78
  %v291 = vunpack.c.l.b16 %v79
  %v292 = vunpack.c.l.b16 %v80
  %v293 = vunpack.c.h.b16 %v80
  %v294 = vunpack.c.l.b16 %v81
  %v295 = vunpack.c.l.b16 %v82
  %v296 = vunpack.c.h.b16 %v82
  %v297 = vunpack.c.l.b16 %v83
  %v298 = vunpack.c.l.b16 %v84
  %v299 = vunpack.c.h.b16 %v84
  %v300 = vunpack.c.l.b16 %v85
  %v301 = vunpack.c.l.b16 %v86
  %v302 = vunpack.c.h.b16 %v86
  %v303 = vunpack.c.l.b16 %v87
  %v304 = vunpack.c.l.b16 %v88
  %v305 = vunpack.c.h.b16 %v88
  %v306 = vunpack.c.l.b16 %v89
  %v307 = vunpack.c.l.b16 %v90
  %v308 = vunpack.c.h.b16 %v90
  %v309 = vunpack.c.l.b16 %v91
  %v310 = vunpack.c.l.b16 %v92
  %v311 = vunpack.c.h.b16 %v92
  %v312 = vunpack.c.l.b16 %v93
  %v313 = vunpack.c.l.b16 %v94
  %v314 = vunpack.c.h.b16 %v94
  %v315 = vunpack.c.l.b16 %v95
  %v316 = vunpack.c.l.b16 %v96
  %v317 = vunpack.c.h.b16 %v96
  %v318 = vunpack.c.l.b16 %v97
  %v319 = vunpack.c.l.b16 %v98
  %v320 = vunpack.c.h.b16 %v98
  %v321 = vunpack.c.l.b16 %v99
  %v322 = vunpack.c.l.b16 %v100
  %v323 = vunpack.c.h.b16 %v100
  %v324 = vunpack.c.l.b16 %v101
  %v325 = vunpack.c.l.b16 %v102
  %v326 = vunpack.c.h.b16 %v102
  %v327 = vunpack.c.l.b16 %v103
  %v328 = vunpack.c.l.b16 %v104
  %v329 = vunpack.c.h.b16 %v104
  %v330 = vunpack.c.l.b16 %v105
  %v331 = vunpack.c.l.b16 %v106
  %v332 = vunpack.c.h.b16 %v106
  %v333 = vunpack.c.l.b16 %v107
  %v334 = vunpack.c.l.b16 %v108
  %v335 = vunpack.c.h.b16 %v108
  %v336 = vunpack.c.l.b16 %v109
  %v337 = vunpack.c.l.b16 %v110
  %v338 = vunpack.c.h.b16 %v110
  %v339 = vunpack.c.l.b16 %v111
  %v340 = vunpack.c.l.b16 %v112
  %v341 = vunpack.c.h.b16 %v112
  %v342 = vunpack.c.l.b16 %v113
  %v343 = vunpack.c.l.b16 %v114
  %v344 = vunpack.c.h.b16 %v114
  %v345 = vunpack.c.l.b16 %v115
  %v346 = vunpack.c.l.b16 %v116
  %v347 = vunpack.c.h.b16 %v116
  %v348 = vunpack.c.l.b16 %v117
  %v349 = vunpack.c.l.b16 %v118
  %v350 = vunpack.c.h.b16 %v118
  %v351 = vunpack.c.l.b16 %v119
  %v352 = vunpack.c.l.b16 %v120
  %v353 = vunpack.c.h.b16 %v120
  %v354 = vunpack.c.l.b16 %v121
  %v355 = vunpack.c.l.b16 %v122
  %v356 = vunpack.c.h.b16 %v122
  %v357 = vunpack.c.l.b16 %v123
  %v358 = vunpack.c.l.b16 %v124
  %v359 = vunpack.c.h.b16 %v124
  %v360 = vunpack.c.l.b16 %v125
  %v361 = vunpack.c.l.b16 %v126
  %v362 = vunpack.c.h.b16 %v126
  %v363 = vunpack.c.l.b16 %v127
  %v364 = vunpack.c.l.b16 %v128
  %v365 = vunpack.c.h.b16 %v128
  %v366 = vunpack.c.l.b16 %v129
  %v367 = vunpack.c.l.b16 %v130
  %v368 = vunpack.c.h.b16 %v130
  %v369 = vunpack.c.l.b16 %v131
  %v370 = vunpack.c.l.b16 %v132
  %v371 = vunpack.c.h.b16 %v132
  %v372 = vunpack.c.l.b16 %v133
  %v373 = vunpack.c.l.b16 %v134
  %v374 = vunpack.c.h.b16 %v134
  %v375 = vunpack.c.l.b16 %v135
  %v376 = vunpack.c.l.b16 %v136
  %v377 = vunpack.c.h.b16 %v136
  %v378 = vunpack.c.l.b16 %v137
  %v379 = vunpack.c.l.b16 %v138
  %v380 = vunpack.c.h.b16 %v138
  %v381 = vunpack.c.l.b16 %v139
  %v382 = vunpack.c.l.b16 %v140
  %v383 = vunpack.c.h.b16 %v140
  %v384 = vunpack.c.l.b16 %v141
  %v385 = vunpack.c.l.b16 %v142
  %v386 = vunpack.c.h.b16 %v142
  %v387 = vunpack.c.l.b16 %v143
  %v388 = vunpack.c.l.b16 %v144
  %v389 = vunpack.c.h.b16 %v144
  %v390 = vunpack.c.l.b16 %v145
  %v391 = vunpack.c.l.b16 %v146
  %v392 = vunpack.c.h.b16 %v146
  %v393 = vunpack.c.l.b16 %v147
  %v394 = vunpack.c.l.b16 %v148
  %v395 = vunpack.c.h.b16 %v148
  %v396 = vunpack.c.l.b16 %v149
  %v397 = vunpack.c.l.b16 %v150
  %v398 = vunpack.c.h.b16 %v150
  %v399 = vunpack.c.l.b16 %v151
  %v400 = vunpack.c.l.b16 %v152
  %v401 = vunpack.c.h.b16 %v152
  %v402 = vunpack.c.l.b16 %v153
  %v403 = vunpack.c.l.b16 %v154
  %v404 = vunpack.c.h.b16 %v154
  %v405 = vunpack.c.l.b16 %v155
  %v406 = vunpack.c.l.b16 %v156
  %v407 = vunpack.c.h.b16 %v156
  %v408 = vunpack.c.l.b16 %v157
  %v409 = vunpack.c.l.b16 %v158
  %v410 = vunpack.c.h.b16 %v158
  %v411 = vunpack.c.l.b16 %v159
  %v412 = vunpack.c.l.b16 %v160
  %v413 = vunpack.c.h.b16 %v160
  %v414 = vunpack.c.l.b16 %v161
  %v415 = vunpack.c.l.b16 %v162
  %v416 = vunpack.c.h.b16 %v162
  %v417 = vunpack.c.l.b16 %v163
  %v418 = vunpack.c.l.b16 %v164
  %v419 = vunpack.c.h.b16 %v164
  %v420 = vunpack.c.l.b16 %v165
  %v421 = vunpack.c.l.b16 %v166
  %v422 = vunpack.c.h.b16 %v166
  %v423 = vunpack.c.l.b16 %v167
  %v424 = vunpack.c.l.b16 %v168
  %v425 = vunpack.c.h.b16 %v168
  %v426 = vunpack.c.l.b16 %v169
  %v427 = vpack.c.b16 %v286, %v283
  %v428 = vpack.c.b16 %v287, %v284
  %v429 = vpack.c.b16 %v288, %v285
  %v430 = vpack.c.b16 %v292, %v289
  %v431 = vpack.c.b16 %v293, %v290
  %v432 = vpack.c.b16 %v294, %v291
  %v433 = vpack.c.b16 %v298, %v295
  %v434 = vpack.c.b16 %v299, %v296
  %v435 = vpack.c.b16 %v300, %v297
  %v436 = vpack.c.b16 %v304, %v301
  %v437 = vpack.c.b16 %v305, %v302
  %v438 = vpack.c.b16 %v306, %v303
  %v439 = vpack.c.b16 %v310, %v307
  %v440 = vpack.c.b16 %v311, %v308
  %v441 = vpack.c.b16 %v312, %v309
  %v442 = vpack.c.b16 %v316, %v313
  %v443 = vpack.c.b16 %v317, %v314
  %v444 = vpack.c.b16 %v318, %v315
  %v445 = vpack.c.b16 %v322, %v319
  %v446 = vpack.c.b16 %v323, %v320
  %v447 = vpack.c.b16 %v324, %v321
  %v448 = vpack.c.b16 %v328, %v325
  %v449 = vpack.c.b16 %v329, %v326
  %v450 = vpack.c.b16 %v330, %v327
  %v451 = vpack.c.b16 %v334, %v331
  %v452 = vpack.c.b16 %v335, %v332
  %v453 = vpack.c.b16 %v336, %v333
  %v454 = vpack.c.b16 %v340, %v337
  %v455 = vpack.c.b16 %v341, %v338
  %v456 = vpack.c.b16 %v342, %v339
  %v457 = vpack.c.b16 %v346, %v343
  %v458 = vpack.c.b16 %v347, %v344
  %v459 = vpack.c.b16 %v348, %v345
  %v460 = vpack.c.b16 %v352, %v349
  %v461 = vpack.c.b16 %v353, %v350
  %v462 = vpack.c.b16 %v354, %v351
  %v463 = vpack.c.b16 %v358, %v355
  %v464 = vpack.c.b16 %v359, %v356
  %v465 = vpack.c.b16 %v360, %v357
  %v466 = vpack.c.b16 %v364, %v361
  %v467 = vpack.c.b16 %v365, %v362
  %v468 = vpack.c.b16 %v366, %v363
  %v469 = vpack.c.b16 %v370, %v367
  %v470 = vpack.c.b16 %v371, %v368
  %v471 = vpack.c.b16 %v372, %v369
  %v472 = vpack.c.b16 %v376, %v373
  %v473 = vpack.c.b16 %v377, %v374
  %v474 = vpack.c.b16 %v378, %v375
  %v475 = vpack.c.b16 %v382, %v379
  %v476 = vpack.c.b16 %v383, %v380
  %v477 = vpack.c.b16 %v384, %v381
  %v478 = vpack.c.b16 %v388, %v385
  %v479 = vpack.c.b16 %v389, %v386
  %v480 = vpack.c.b16 %v390, %v387
  %v481 = vpack.c.b16 %v394, %v391
  %v482 = vpack.c.b16 %v395, %v392
  %v483 = vpack.c.b16 %v396, %v393
  %v484 = vpack.c.b16 %v400, %v397
  %v485 = vpack.c.b16 %v401, %v398
  %v486 = vpack.c.b16 %v402, %v399
  %v487 = vpack.c.b16 %v406, %v403
  %v488 = vpack.c.b16 %v407, %v404
  %v489 = vpack.c.b16 %v408, %v405
  %v490 = vpack.c.b16 %v412, %v409
  %v491 = vpack.c.b16 %v413, %v410
  %v492 = vpack.c.b16 %v414, %v411
  %v493 = vpack.c.b16 %v418, %v415
  %v494 = vpack.c.b16 %v419, %v416
  %v495 = vpack.c.b16 %v420, %v417
  %v496 = vpack.c.b16 %v424, %v421
  %v497 = vpack.c.b16 %v425, %v422
  %v498 = vpack.c.b16 %v426, %v423
  %571 = vmatprep.subr.bf16.mxu0 %v449
  %572 = vmatpush1.bf16.msra.mxu0 %v448
  %573 = vmatprep.subr.bf16.mxu0 %v446
  %574 = vmatpush1.bf16.msra.mxu0 %v445
  %575 = vmatprep.subr.bf16.mxu0 %v443
  %576 = vmatpush1.bf16.msra.mxu0 %v442
  %577 = vmatprep.subr.bf16.mxu0 %v440
  %578 = vmatpush1.bf16.msra.mxu0 %v439
  %579 = vmatprep.subr.bf16.mxu0 %v437
  %580 = vmatpush1.bf16.msra.mxu0 %v436
  %581 = vmatprep.subr.bf16.mxu0 %v434
  %582 = vmatpush1.bf16.msra.mxu0 %v433
  %583 = vmatprep.subr.bf16.mxu0 %v431
  %584 = vmatpush1.bf16.msra.mxu0 %v430
  %585 = vmatprep.subr.bf16.mxu0 %v428
  %586 = vmatpush1.bf16.msra.mxu0 %v427
  %587 = vmatprep.subr.bf16.mxu0 %v473
  %588 = vmatpush2.bf16.msra.mxu0 %v472
  %589 = vmatprep.subr.bf16.mxu0 %v470
  %590 = vmatpush2.bf16.msra.mxu0 %v469
  %591 = vmatprep.subr.bf16.mxu0 %v467
  %592 = vmatpush2.bf16.msra.mxu0 %v466
  %593 = vmatprep.subr.bf16.mxu0 %v464
  %594 = vmatpush2.bf16.msra.mxu0 %v463
  %595 = vmatprep.subr.bf16.mxu0 %v461
  %596 = vmatpush2.bf16.msra.mxu0 %v460
  %597 = vmatprep.subr.bf16.mxu0 %v458
  %598 = vmatpush2.bf16.msra.mxu0 %v457
  %599 = vmatprep.subr.bf16.mxu0 %v455
  %600 = vmatpush2.bf16.msra.mxu0 %v454
  %601 = vmatprep.subr.bf16.mxu0 %v452
  %602 = vmatpush2.bf16.msra.mxu0 %v451
  %603 = vmatprep.mubr.bf16.mxu0 %v72
  %604 = vmatmul.mubr.bf16.gmra.mxu0 %v71
  %v605 = vpop.f32.mrf.mxu0
  %v606 = vadd.f32 %v175, %v605
  %v607 = vpop.f32.mrf.mxu0
  %v608 = vadd.f32 %v179, %v607
  %v609 = vpop.f32.mrf.mxu0
  %v610 = vpop.f32.mrf.mxu0
  %611 = vdwg.mxu0
  %612 = vmatprep.subr.bf16.mxu0 %v497
  %613 = vmatpush1.bf16.msra.mxu0 %v496
  %614 = vmatprep.subr.bf16.mxu0 %v494
  %615 = vmatpush1.bf16.msra.mxu0 %v493
  %616 = vmatprep.subr.bf16.mxu0 %v491
  %617 = vmatpush1.bf16.msra.mxu0 %v490
  %618 = vmatprep.subr.bf16.mxu0 %v488
  %619 = vmatpush1.bf16.msra.mxu0 %v487
  %620 = vmatprep.subr.bf16.mxu0 %v485
  %621 = vmatpush1.bf16.msra.mxu0 %v484
  %622 = vmatprep.subr.bf16.mxu0 %v482
  %623 = vmatpush1.bf16.msra.mxu0 %v481
  %624 = vmatprep.subr.bf16.mxu0 %v479
  %625 = vmatpush1.bf16.msra.mxu0 %v478
  %626 = vmatprep.subr.bf16.mxu0 %v476
  %627 = vmatpush1.bf16.msra.mxu0 %v475
  %628 = vmatprep.subr.bf16.mxu0 0
  %629 = vmatpush2.bf16.msra.mxu0 0
  %630 = vmatprep.subr.bf16.mxu0 0
  %631 = vmatpush2.bf16.msra.mxu0 0
  %632 = vmatprep.subr.bf16.mxu0 0
  %633 = vmatpush2.bf16.msra.mxu0 0
  %634 = vmatprep.subr.bf16.mxu0 0
  %635 = vmatpush2.bf16.msra.mxu0 0
  %636 = vmatprep.subr.bf16.mxu0 0
  %637 = vmatpush2.bf16.msra.mxu0 0
  %638 = vmatprep.subr.bf16.mxu0 0
  %639 = vmatpush2.bf16.msra.mxu0 0
  %640 = vmatprep.subr.bf16.mxu0 0
  %641 = vmatpush2.bf16.msra.mxu0 0
  %642 = vmatprep.subr.bf16.mxu0 0
  %643 = vmatpush2.bf16.msra.mxu0 0
  %644 = vmatprep.mubr.bf16.mxu0 0
  %645 = vmatmul.mubr.bf16.gmra.mxu0 %v73
  %v646 = vpop.f32.mrf.mxu0
  %v647 = vadd.f32 %v606, %v646
  %v648 = vpop.f32.mrf.mxu0
  %v649 = vadd.f32 %v608, %v648
  %v650 = vpop.f32.mrf.mxu0
  %v651 = vpop.f32.mrf.mxu0
  %652 = vdwg.mxu0
  %653 = vmatprep.subr.bf16.mxu0 0
  %654 = vmatpush1.bf16.msra.mxu0 %v450
  %655 = vmatprep.subr.bf16.mxu0 0
  %656 = vmatpush1.bf16.msra.mxu0 %v447
  %657 = vmatprep.subr.bf16.mxu0 0
  %658 = vmatpush1.bf16.msra.mxu0 %v444
  %659 = vmatprep.subr.bf16.mxu0 0
  %660 = vmatpush1.bf16.msra.mxu0 %v441
  %661 = vmatprep.subr.bf16.mxu0 0
  %662 = vmatpush1.bf16.msra.mxu0 %v438
  %663 = vmatprep.subr.bf16.mxu0 0
  %664 = vmatpush1.bf16.msra.mxu0 %v435
  %665 = vmatprep.subr.bf16.mxu0 0
  %666 = vmatpush1.bf16.msra.mxu0 %v432
  %667 = vmatprep.subr.bf16.mxu0 0
  %668 = vmatpush1.bf16.msra.mxu0 %v429
  %669 = vmatprep.subr.bf16.mxu0 0
  %670 = vmatpush2.bf16.msra.mxu0 %v474
  %671 = vmatprep.subr.bf16.mxu0 0
  %672 = vmatpush2.bf16.msra.mxu0 %v471
  %673 = vmatprep.subr.bf16.mxu0 0
  %674 = vmatpush2.bf16.msra.mxu0 %v468
  %675 = vmatprep.subr.bf16.mxu0 0
  %676 = vmatpush2.bf16.msra.mxu0 %v465
  %677 = vmatprep.subr.bf16.mxu0 0
  %678 = vmatpush2.bf16.msra.mxu0 %v462
  %679 = vmatprep.subr.bf16.mxu0 0
  %680 = vmatpush2.bf16.msra.mxu0 %v459
  %681 = vmatprep.subr.bf16.mxu0 0
  %682 = vmatpush2.bf16.msra.mxu0 %v456
  %683 = vmatprep.subr.bf16.mxu0 0
  %684 = vmatpush2.bf16.msra.mxu0 %v453
  %685 = vmatprep.mubr.bf16.mxu0 %v72
  %686 = vmatmul.mubr.bf16.gmra.mxu0 %v71
  %v687 = vpop.f32.mrf.mxu0
  %v688 = vadd.f32 %v183, %v687
  %v689 = vpop.f32.mrf.mxu0
  %v690 = vpop.f32.mrf.mxu0
  %v691 = vpop.f32.mrf.mxu0
  %692 = vdwg.mxu0
  %693 = vmatprep.subr.bf16.mxu0 0
  %694 = vmatpush1.bf16.msra.mxu0 %v498
  %695 = vmatprep.subr.bf16.mxu0 0
  %696 = vmatpush1.bf16.msra.mxu0 %v495
  %697 = vmatprep.subr.bf16.mxu0 0
  %698 = vmatpush1.bf16.msra.mxu0 %v492
  %699 = vmatprep.subr.bf16.mxu0 0
  %700 = vmatpush1.bf16.msra.mxu0 %v489
  %701 = vmatprep.subr.bf16.mxu0 0
  %702 = vmatpush1.bf16.msra.mxu0 %v486
  %703 = vmatprep.subr.bf16.mxu0 0
  %704 = vmatpush1.bf16.msra.mxu0 %v483
  %705 = vmatprep.subr.bf16.mxu0 0
  %706 = vmatpush1.bf16.msra.mxu0 %v480
  %707 = vmatprep.subr.bf16.mxu0 0
  %708 = vmatpush1.bf16.msra.mxu0 %v477
  %709 = vmatprep.subr.bf16.mxu0 0
  %710 = vmatpush2.bf16.msra.mxu0 0
  %711 = vmatprep.subr.bf16.mxu0 0
  %712 = vmatpush2.bf16.msra.mxu0 0
  %713 = vmatprep.subr.bf16.mxu0 0
  %714 = vmatpush2.bf16.msra.mxu0 0
  %715 = vmatprep.subr.bf16.mxu0 0
  %716 = vmatpush2.bf16.msra.mxu0 0
  %717 = vmatprep.subr.bf16.mxu0 0
  %718 = vmatpush2.bf16.msra.mxu0 0
  %719 = vmatprep.subr.bf16.mxu0 0
  %720 = vmatpush2.bf16.msra.mxu0 0
  %721 = vmatprep.subr.bf16.mxu0 0
  %722 = vmatpush2.bf16.msra.mxu0 0
  %723 = vmatprep.subr.bf16.mxu0 0
  %724 = vmatpush2.bf16.msra.mxu0 0
  %725 = vmatprep.mubr.bf16.mxu0 0
  %726 = vmatmul.mubr.bf16.gmra.mxu0 %v73
  %v727 = vpop.f32.mrf.mxu0
  %v728 = vadd.f32 %v688, %v727
  %v729 = vpop.f32.mrf.mxu0
  %v730 = vpop.f32.mrf.mxu0
  %v731 = vpop.f32.mrf.mxu0
  %732 = vdwg.mxu0
  %v733 = vpack.c.bf16 %v70, %v70
  %v734 = vld [vmem:[%s9] sm:$0xff]
  %v735 = vld [vmem:[%s9 + $0x8] sm:$0xff]
  %v736 = vld [vmem:[%s9 + $0x10] sm:$0xff]
  %v737 = vld [vmem:[%s9 + $0x18] sm:$0xff]
  %v738 = vld [vmem:[%s9 + $0x20] sm:$0xff]
  %v739 = vld [vmem:[%s9 + $0x28] sm:$0xff]
  %v740 = vld [vmem:[%s9 + $0x30] sm:$0xff]
  %v741 = vld [vmem:[%s9 + $0x38] sm:$0xff]
  %v742 = vld [vmem:[%s9 + $0x40] sm:$0xff]
  %v743 = vld [vmem:[%s9 + $0x48] sm:$0xff]
  %v744 = vld [vmem:[%s9 + $0x50] sm:$0xff]
  %v745 = vld [vmem:[%s9 + $0x58] sm:$0xff]
  %v746 = vld [vmem:[%s9 + $0x60] sm:$0xff]
  %v747 = vld [vmem:[%s9 + $0x68] sm:$0xff]
  %v748 = vld [vmem:[%s9 + $0x70] sm:$0xff]
  %v749 = vld [vmem:[%s9 + $0x78] sm:$0xff]
  %v766 = vunpack.c.l.b16 %v734
  %v767 = vunpack.c.h.b16 %v734
  %v768 = vunpack.c.l.b16 %v735
  %v769 = vunpack.c.h.b16 %v735
  %v770 = vunpack.c.l.b16 %v736
  %v771 = vunpack.c.h.b16 %v736
  %v772 = vunpack.c.l.b16 %v737
  %v773 = vunpack.c.h.b16 %v737
  %v774 = vunpack.c.l.b16 %v738
  %v775 = vunpack.c.h.b16 %v738
  %v776 = vunpack.c.l.b16 %v739
  %v777 = vunpack.c.h.b16 %v739
  %v778 = vunpack.c.l.b16 %v740
  %v779 = vunpack.c.h.b16 %v740
  %v780 = vunpack.c.l.b16 %v741
  %v781 = vunpack.c.h.b16 %v741
  %v782 = vunpack.c.l.b16 %v742
  %v783 = vunpack.c.h.b16 %v742
  %v784 = vunpack.c.l.b16 %v743
  %v785 = vunpack.c.h.b16 %v743
  %v786 = vunpack.c.l.b16 %v744
  %v787 = vunpack.c.h.b16 %v744
  %v788 = vunpack.c.l.b16 %v745
  %v789 = vunpack.c.h.b16 %v745
  %v790 = vunpack.c.l.b16 %v746
  %v791 = vunpack.c.h.b16 %v746
  %v792 = vunpack.c.l.b16 %v747
  %v793 = vunpack.c.h.b16 %v747
  %v794 = vunpack.c.l.b16 %v748
  %v795 = vunpack.c.h.b16 %v748
  %v796 = vunpack.c.l.b16 %v749
  %v797 = vunpack.c.h.b16 %v749
  %v798 = vpack.c.b16 %v768, %v766
  %v799 = vpack.c.b16 %v769, %v767
  %v800 = vpack.c.b16 %v772, %v770
  %v801 = vpack.c.b16 %v773, %v771
  %v802 = vpack.c.b16 %v776, %v774
  %v803 = vpack.c.b16 %v777, %v775
  %v804 = vpack.c.b16 %v780, %v778
  %v805 = vpack.c.b16 %v781, %v779
  %v806 = vpack.c.b16 %v784, %v782
  %v807 = vpack.c.b16 %v785, %v783
  %v808 = vpack.c.b16 %v788, %v786
  %v809 = vpack.c.b16 %v789, %v787
  %v810 = vpack.c.b16 %v792, %v790
  %v811 = vpack.c.b16 %v793, %v791
  %v812 = vpack.c.b16 %v796, %v794
  %v813 = vpack.c.b16 %v797, %v795
  %830 = vmatprep.subr.bf16.mxu0 %v813
  %831 = vmatpush1.bf16.msra.mxu0 %v812
  %832 = vmatprep.subr.bf16.mxu0 %v811
  %833 = vmatpush1.bf16.msra.mxu0 %v810
  %834 = vmatprep.subr.bf16.mxu0 %v809
  %835 = vmatpush1.bf16.msra.mxu0 %v808
  %836 = vmatprep.subr.bf16.mxu0 %v807
  %837 = vmatpush1.bf16.msra.mxu0 %v806
  %838 = vmatprep.subr.bf16.mxu0 %v805
  %839 = vmatpush1.bf16.msra.mxu0 %v804
  %840 = vmatprep.subr.bf16.mxu0 %v803
  %841 = vmatpush1.bf16.msra.mxu0 %v802
  %842 = vmatprep.subr.bf16.mxu0 %v801
  %843 = vmatpush1.bf16.msra.mxu0 %v800
  %844 = vmatprep.subr.bf16.mxu0 %v799
  %845 = vmatpush1.bf16.msra.mxu0 %v798
  %846 = vmatprep.subr.bf16.mxu0 0
  %847 = vmatpush2.bf16.msra.mxu0 0
  %848 = vmatprep.subr.bf16.mxu0 0
  %849 = vmatpush2.bf16.msra.mxu0 0
  %850 = vmatprep.subr.bf16.mxu0 0
  %851 = vmatpush2.bf16.msra.mxu0 0
  %852 = vmatprep.subr.bf16.mxu0 0
  %853 = vmatpush2.bf16.msra.mxu0 0
  %854 = vmatprep.subr.bf16.mxu0 0
  %855 = vmatpush2.bf16.msra.mxu0 0
  %856 = vmatprep.subr.bf16.mxu0 0
  %857 = vmatpush2.bf16.msra.mxu0 0
  %858 = vmatprep.subr.bf16.mxu0 0
  %859 = vmatpush2.bf16.msra.mxu0 0
  %860 = vmatprep.subr.bf16.mxu0 0
  %861 = vmatpush2.bf16.msra.mxu0 0
  %862 = vmatprep.mubr.bf16.mxu0 0
  %863 = vmatmul.mubr.bf16.gmra.mxu0 %v733
  %v864 = vpop.f32.mrf.mxu0
  %v865 = vadd.f32 0.0, %v864
  %v866 = vpop.f32.mrf.mxu0
  %v867 = vadd.f32 0.0, %v866
  %v868 = vpop.f32.mrf.mxu0
  %v869 = vpop.f32.mrf.mxu0
  %870 = vdwg.mxu0
  %v871 = vadd.f32 %v647, %v865
  %v872 = vmul.f32 %v871, 0.5
  %v873 = vtanh.pop %v872
  %v874 = vmul.f32 %v873, 0.5
  %v875 = vadd.f32 %v874, 0.5
  %v876 = vadd.f32 %v649, %v867
  %v877 = vmul.f32 %v876, 0.5
  %v878 = vtanh.pop %v877
  %v879 = vmul.f32 %v878, 0.5
  %v880 = vadd.f32 %v879, 0.5
  %v881 = vmul.f32 %v875, %v70
  %v882 = vpack.c.bf16 %v881, %v881
  %v883 = vld [vmem:[%s10] sm:$0xf]
  %v884 = vld [vmem:[%s10 + $0x4] sm:$0xf]
  %v885 = vld [vmem:[%s10 + $0x8] sm:$0xf]
  %v886 = vld [vmem:[%s10 + $0xc] sm:$0xf]
  %v887 = vld [vmem:[%s10 + $0x10] sm:$0xf]
  %v888 = vld [vmem:[%s10 + $0x14] sm:$0xf]
  %v889 = vld [vmem:[%s10 + $0x18] sm:$0xf]
  %v890 = vld [vmem:[%s10 + $0x1c] sm:$0xf]
  %v891 = vld [vmem:[%s10 + $0x20] sm:$0xf]
  %v892 = vld [vmem:[%s10 + $0x24] sm:$0xf]
  %v893 = vld [vmem:[%s10 + $0x28] sm:$0xf]
  %v894 = vld [vmem:[%s10 + $0x2c] sm:$0xf]
  %v895 = vld [vmem:[%s10 + $0x30] sm:$0xf]
  %v896 = vld [vmem:[%s10 + $0x34] sm:$0xf]
  %v897 = vld [vmem:[%s10 + $0x38] sm:$0xf]
  %v898 = vld [vmem:[%s10 + $0x3c] sm:$0xf]
  %v915 = vunpack.c.l.b16 %v883
  %v916 = vunpack.c.l.b16 %v884
  %v917 = vunpack.c.l.b16 %v885
  %v918 = vunpack.c.l.b16 %v886
  %v919 = vunpack.c.l.b16 %v887
  %v920 = vunpack.c.l.b16 %v888
  %v921 = vunpack.c.l.b16 %v889
  %v922 = vunpack.c.l.b16 %v890
  %v923 = vunpack.c.l.b16 %v891
  %v924 = vunpack.c.l.b16 %v892
  %v925 = vunpack.c.l.b16 %v893
  %v926 = vunpack.c.l.b16 %v894
  %v927 = vunpack.c.l.b16 %v895
  %v928 = vunpack.c.l.b16 %v896
  %v929 = vunpack.c.l.b16 %v897
  %v930 = vunpack.c.l.b16 %v898
  %v931 = vpack.c.b16 %v916, %v915
  %v932 = vpack.c.b16 %v918, %v917
  %v933 = vpack.c.b16 %v920, %v919
  %v934 = vpack.c.b16 %v922, %v921
  %v935 = vpack.c.b16 %v924, %v923
  %v936 = vpack.c.b16 %v926, %v925
  %v937 = vpack.c.b16 %v928, %v927
  %v938 = vpack.c.b16 %v930, %v929
  %947 = vmatprep.subr.bf16.mxu0 0
  %948 = vmatpush1.bf16.msra.mxu0 %v938
  %949 = vmatprep.subr.bf16.mxu0 0
  %950 = vmatpush1.bf16.msra.mxu0 %v937
  %951 = vmatprep.subr.bf16.mxu0 0
  %952 = vmatpush1.bf16.msra.mxu0 %v936
  %953 = vmatprep.subr.bf16.mxu0 0
  %954 = vmatpush1.bf16.msra.mxu0 %v935
  %955 = vmatprep.subr.bf16.mxu0 0
  %956 = vmatpush1.bf16.msra.mxu0 %v934
  %957 = vmatprep.subr.bf16.mxu0 0
  %958 = vmatpush1.bf16.msra.mxu0 %v933
  %959 = vmatprep.subr.bf16.mxu0 0
  %960 = vmatpush1.bf16.msra.mxu0 %v932
  %961 = vmatprep.subr.bf16.mxu0 0
  %962 = vmatpush1.bf16.msra.mxu0 %v931
  %963 = vmatprep.subr.bf16.mxu0 0
  %964 = vmatpush2.bf16.msra.mxu0 0
  %965 = vmatprep.subr.bf16.mxu0 0
  %966 = vmatpush2.bf16.msra.mxu0 0
  %967 = vmatprep.subr.bf16.mxu0 0
  %968 = vmatpush2.bf16.msra.mxu0 0
  %969 = vmatprep.subr.bf16.mxu0 0
  %970 = vmatpush2.bf16.msra.mxu0 0
  %971 = vmatprep.subr.bf16.mxu0 0
  %972 = vmatpush2.bf16.msra.mxu0 0
  %973 = vmatprep.subr.bf16.mxu0 0
  %974 = vmatpush2.bf16.msra.mxu0 0
  %975 = vmatprep.subr.bf16.mxu0 0
  %976 = vmatpush2.bf16.msra.mxu0 0
  %977 = vmatprep.subr.bf16.mxu0 0
  %978 = vmatpush2.bf16.msra.mxu0 0
  %979 = vmatprep.mubr.bf16.mxu0 0
  %980 = vmatmul.mubr.bf16.gmra.mxu0 %v882
  %v981 = vpop.f32.mrf.mxu0
  %v982 = vadd.f32 0.0, %v981
  %v983 = vpop.f32.mrf.mxu0
  %v984 = vpop.f32.mrf.mxu0
  %v985 = vpop.f32.mrf.mxu0
  %986 = vdwg.mxu0
  %v987 = vadd.f32 %v728, %v982
  %v988 = vtanh.pop %v987
  %v989 = vsub.f32 1.0, %v880
  %v990 = vmul.f32 %v989, %v70
  %v991 = vmul.f32 %v880, %v988
  %v992 = vadd.f32 %v990, %v991
  %993 = vst [vmem:[%s11] sm:$0xff] %v992
  %v994 = vsub.f32 %v988, %v70
  %v995 = vmul.f32 %v880, %v994
  %996 = vst [vmem:[%s12] sm:$0xff] %v995
  %997 = vst [vmem:[%s13] sm:$0xff] %v62
  // Predicated region
  $region46: #{gru_tv_cell.1} parent=0 // pred_check
    _
  $region47: #{gru_tv_cell.1} parent=0 // pred_check_branch
    %999 = sbr.rel (0) target = $region49
  $region48: #{gru_tv_cell.1} parent=0 // pred_region
    _
  $region49: #{gru_tv_cell.1} parent=0 // pred_fallthru
    _
  // Predicated region
  $region50: #{gru_tv_cell.1} parent=0 // pred_check
    _
  $region51: #{gru_tv_cell.1} parent=0 // pred_check_branch
    %1001 = sbr.rel (0) target = $region53
  $region52: #{gru_tv_cell.1} parent=0 // pred_region
    _
  $region53: #{gru_tv_cell.1} parent=0 // pred_fallthru
    _
  // Predicated region
  $region54: #{gru_tv_cell.1} parent=0 // pred_check
    _
  $region55: #{gru_tv_cell.1} parent=0 // pred_check_branch
    %1003 = sbr.rel (0) target = $region57
  $region56: #{gru_tv_cell.1} parent=0 // pred_region
    _
  $region57: #{gru_tv_cell.1} parent=0 // pred_fallthru
    _
  // Predicated region
  $region58: #{gru_tv_cell.1} parent=0 // pred_check
    _
  $region59: #{gru_tv_cell.1} parent=0 // pred_check_branch
    %1005 = sbr.rel (0) target = $region61
  $region60: #{gru_tv_cell.1} parent=0 // pred_region
    _
  $region61: #{gru_tv_cell.1} parent=0 // pred_fallthru
    _
  // Predicated region
  $region62: #{gru_tv_cell.1} parent=0 // pred_check
    _
  $region63: #{gru_tv_cell.1} parent=0 // pred_check_branch
    %1007 = sbr.rel (0) target = $region65
  $region64: #{gru_tv_cell.1} parent=0 // pred_region
    _
  $region65: #{gru_tv_cell.1} parent=0 // pred_fallthru
    _
  // Predicated region
  $region66: #{gru_tv_cell.1} parent=0 // pred_check
    _
  $region67: #{gru_tv_cell.1} parent=0 // pred_check_branch
    %1009 = sbr.rel (0) target = $region69
  $region68: #{gru_tv_cell.1} parent=0 // pred_region
    _
  $region69: #{gru_tv_cell.1} parent=0 // pred_fallthru
    _

</llo_original>
